<compile_context>
chip_gen: v7x
topology: tpu7x:2x2x1
jax: 0.10.0
libtpu: 0.0.40
codegen_flags: <defaults>
</compile_context>

<pallas_src>
import jax
import jax.numpy as jnp
from jax.experimental import pallas as pl
from jax.experimental.pallas import tpu as pltpu

LANE = 128


def _round_up(x, m):
    return (x + m - 1) // m * m


def cnn_block2d(x_nchw, w_oihw, bias, gamma, beta, eps=1e-5,
                tile_m=512, compute_dtype=jnp.float32):
    """Forward pass of CNNBlock2d(in_ch, out_ch, k, down_sample=2, use_batch_norm=True)."""
    N, Cin, H, W = x_nchw.shape
    Cout, Cin2, KH, KW = w_oihw.shape
    assert Cin2 == Cin and KH == KW and KH % 2 == 1
    assert H % 2 == 0 and W % 2 == 0, "down_sample=2 assumes even spatial dims"
    p = (KH - 1) // 2
    Hh, Wh = H // 2, W // 2
    NHW = N * Hh * Wh

    Kdim = KH * KW * Cin
    Kpad = _round_up(Kdim, LANE)           # lane-dense contraction dim
    Cpad = _round_up(Cout, LANE)           # lane-dense channel dim
    TM = min(tile_m, _round_up(NHW, 8))    # row-tile (sublane axis), >=512 at real sizes
    NHWp = _round_up(NHW, TM)
    num_tiles = NHWp // TM

    # ------------- wrapper-side layout plumbing (no compute) ---------------------
    x = jnp.transpose(x_nchw, (0, 2, 3, 1)).astype(jnp.float32)       # NHWC
    xpad = jnp.pad(x, ((0, 0), (p, p), (p, p), (0, 0)))               # zero pad

    # 4 pool phases (di,dj in {0,1}); im2col each into (NHW, KH*KW*Cin) slabs.
    phase_slabs = []
    for di in range(2):
        for dj in range(2):
            taps = []
            for kh in range(KH):
                for kw in range(KW):
                    t = xpad[:, di + kh::2, dj + kw::2, :][:, :Hh, :Wh, :]
                    taps.append(t)                                    # (N,Hh,Wh,Cin)
            slab = jnp.concatenate(taps, axis=-1).reshape(NHW, Kdim)  # order (kh,kw,cin)
            phase_slabs.append(slab)
    xph = jnp.stack(phase_slabs, axis=0)                              # (4, NHW, Kdim)
    xph = jnp.pad(xph, ((0, 0), (0, NHWp - NHW), (0, Kpad - Kdim)))
    xph = xph.astype(compute_dtype)

    # weights: (O,I,KH,KW) -> (KH,KW,Cin,Cout) -> (Kdim, Cout), pad to (Kpad, Cpad)
    w2d = jnp.transpose(w_oihw, (2, 3, 1, 0)).astype(jnp.float32).reshape(Kdim, Cout)
    w_p = jnp.pad(w2d, ((0, Kpad - Kdim), (0, Cpad - Cout))).astype(compute_dtype)
    b_p = jnp.pad(bias.astype(jnp.float32).reshape(1, Cout), ((0, 0), (0, Cpad - Cout)))

    cparams = pltpu.CompilerParams(
        dimension_semantics=("parallel", "parallel"),
        vmem_limit_bytes=32 * 1024 * 1024)

    # ------------- pass 1: conv (one matmul per phase tile) + BN partial stats ---
    def conv_stats_kernel(xp_ref, w_ref, b_ref, y_ref, stat_ref):
        acc = jnp.dot(xp_ref[0], w_ref[...], preferred_element_type=jnp.float32)
        acc = acc + b_ref[...]
        if NHWp > NHW:  # trace-time constant: mask padded rows out of the statistics
            row0 = pl.program_id(1) * TM
            rows = jax.lax.broadcasted_iota(jnp.int32, (TM, 1), 0) + row0
            accm = jnp.where(rows < NHW, acc, 0.0)
        else:
            accm = acc
        s = jnp.sum(accm, axis=0, keepdims=True)
        ss = jnp.sum(accm * accm, axis=0, keepdims=True)
        stat_ref[...] = jnp.concatenate([s, ss], axis=0)[None, None]
        y_ref[0] = acc

    y, stat_part = pl.pallas_call(
        conv_stats_kernel,
        out_shape=(jax.ShapeDtypeStruct((4, NHWp, Cpad), jnp.float32),
                   jax.ShapeDtypeStruct((4, num_tiles, 2, Cpad), jnp.float32)),
        grid_spec=pltpu.PrefetchScalarGridSpec(
            num_scalar_prefetch=0,
            grid=(4, num_tiles),
            in_specs=[
                pl.BlockSpec((1, TM, Kpad), lambda ph, m: (ph, m, 0)),
                pl.BlockSpec((Kpad, Cpad), lambda ph, m: (0, 0)),
                pl.BlockSpec((1, Cpad), lambda ph, m: (0, 0)),
            ],
            out_specs=(
                pl.BlockSpec((1, TM, Cpad), lambda ph, m: (ph, m, 0)),
                pl.BlockSpec((1, 1, 2, Cpad), lambda ph, m: (ph, m, 0, 0)),
            )),
        compiler_params=cparams,
    )(xph, w_p, b_p)

    # ------------- tiny finalize (XLA): batch stats -> folded scale/shift --------
    stats = jnp.sum(stat_part, axis=(0, 1))                 # (2, Cpad)
    count = jnp.float32(4 * NHW)                            # == N * H * W
    mean = stats[0] / count
    var = jnp.maximum(stats[1] / count - mean * mean, 0.0)  # biased (train-mode) var
    inv = jax.lax.rsqrt(var + eps)
    g_p = jnp.pad(gamma.astype(jnp.float32), (0, Cpad - Cout))
    bt_p = jnp.pad(beta.astype(jnp.float32), (0, Cpad - Cout))
    scale = (inv * g_p).reshape(1, Cpad)
    shift = (bt_p - mean * inv * g_p).reshape(1, Cpad)

    # ------------- pass 2: normalize, 2x2 max-pool (phase max), ReLU -------------
    def bn_pool_relu_kernel(y_ref, sc_ref, sh_ref, o_ref):
        sc = sc_ref[...]
        sh = sh_ref[...]
        n0 = y_ref[0] * sc + sh
        n1 = y_ref[1] * sc + sh
        n2 = y_ref[2] * sc + sh
        n3 = y_ref[3] * sc + sh
        pooled = jnp.maximum(jnp.maximum(n0, n1), jnp.maximum(n2, n3))
        o_ref[...] = jnp.maximum(pooled, 0.0)

    out_p = pl.pallas_call(
        bn_pool_relu_kernel,
        out_shape=jax.ShapeDtypeStruct((NHWp, Cpad), jnp.float32),
        grid_spec=pltpu.PrefetchScalarGridSpec(
            num_scalar_prefetch=0,
            grid=(num_tiles,),
            in_specs=[
                pl.BlockSpec((4, TM, Cpad), lambda m: (0, m, 0)),
                pl.BlockSpec((1, Cpad), lambda m: (0, 0)),
                pl.BlockSpec((1, Cpad), lambda m: (0, 0)),
            ],
            out_specs=pl.BlockSpec((TM, Cpad), lambda m: (m, 0))),
        compiler_params=pltpu.CompilerParams(
            dimension_semantics=("parallel",),
            vmem_limit_bytes=32 * 1024 * 1024),
    )(y, scale, shift)

    # slice off lane/row padding, back to PyTorch NCHW convention
    out = out_p[:NHW, :Cout].reshape(N, Hh, Wh, Cout)
    return jnp.transpose(out, (0, 3, 1, 2))


# ---- pure-JAX reference (for correctness check only) ---------------------------
def reference(x_nchw, w_oihw, bias, gamma, beta, eps=1e-5):
    p = (w_oihw.shape[2] - 1) // 2
    y = jax.lax.conv_general_dilated(
        x_nchw, w_oihw, window_strides=(1, 1), padding=[(p, p), (p, p)],
        dimension_numbers=("NCHW", "OIHW", "NCHW"))
    y = y + bias[None, :, None, None]
    mean = jnp.mean(y, axis=(0, 2, 3), keepdims=True)
    var = jnp.mean((y - mean) ** 2, axis=(0, 2, 3), keepdims=True)
    y = (y - mean) / jnp.sqrt(var + eps)
    y = y * gamma[None, :, None, None] + beta[None, :, None, None]
    y = jax.lax.reduce_window(y, -jnp.inf, jax.lax.max,
                              (1, 1, 2, 2), (1, 1, 2, 2), "VALID")
    return jnp.maximum(y, 0.0)


if __name__ == "__main__":
    key = jax.random.PRNGKey(0)
    k1, k2, k3, k4, k5 = jax.random.split(key, 5)

    N, Cin, H, W = 2, 4, 16, 16
    Cout, K = 8, 3

    x = jax.random.normal(k1, (N, Cin, H, W), jnp.float32)
    w = 0.1 * jax.random.normal(k2, (Cout, Cin, K, K), jnp.float32)   # Conv2d.weight
    b = 0.1 * jax.random.normal(k3, (Cout,), jnp.float32)             # Conv2d.bias
    gamma = 1.0 + 0.1 * jax.random.normal(k4, (Cout,), jnp.float32)   # BatchNorm2d.weight
    beta = 0.1 * jax.random.normal(k5, (Cout,), jnp.float32)          # BatchNorm2d.bias

    out = cnn_block2d(x, w, b, gamma, beta)
    out = jax.block_until_ready(out)

    assert out.shape == (N, Cout, H // 2, W // 2), out.shape
    ref = reference(x, w, b, gamma, beta)
    err = float(jnp.max(jnp.abs(out - ref)))
    assert err < 1e-4, f"max abs error {err}"

    print("KERNEL_OK")
</pallas_src>

<mosaic_0001>
module attributes {stable_mosaic.version = 11 : i64} {
  func.func @conv_stats_kernel(%arg0: i32, %arg1: i32, %arg2: memref<1x128x128xf32, #tpu.memory_space<vmem>>, %arg3: memref<128x128xf32, #tpu.memory_space<vmem>>, %arg4: memref<1x128xf32, #tpu.memory_space<vmem>>, %arg5: memref<1x128x128xf32, #tpu.memory_space<vmem>>, %arg6: memref<1x1x2x128xf32, #tpu.memory_space<vmem>>) attributes {dimension_semantics = [#tpu.dimension_semantics<parallel>, #tpu.dimension_semantics<parallel>], iteration_bounds = array<i64: 4, 1>, scalar_prefetch = 0 : i64, scratch_operands = 0 : i64, tpu.core_type = #tpu.core_type<tc>, window_params = [{transform_indices = @transform_0, window_bounds = array<i64: 1, 128, 128>}, {pipeline_mode = #tpu.pipeline_mode<synchronous>, transform_indices = @transform_1, window_bounds = array<i64: 128, 128>}, {pipeline_mode = #tpu.pipeline_mode<synchronous>, transform_indices = @transform_2, window_bounds = array<i64: 1, 128>}, {transform_indices = @transform_3, window_bounds = array<i64: 1, 128, 128>}, {transform_indices = @transform_4, window_bounds = array<i64: 1, 1, 2, 128>}]} {
    %c0 = arith.constant 0 : index
    %c0_0 = arith.constant 0 : index
    %c0_1 = arith.constant 0 : index
    %0 = vector.load %arg2[%c0, %c0_0, %c0_1] : memref<1x128x128xf32, #tpu.memory_space<vmem>>, vector<1x128x128xf32>
    %1 = vector.shape_cast %0 : vector<1x128x128xf32> to vector<128x128xf32>
    %c0_2 = arith.constant 0 : index
    %c0_3 = arith.constant 0 : index
    %2 = vector.load %arg3[%c0_2, %c0_3] : memref<128x128xf32, #tpu.memory_space<vmem>>, vector<128x128xf32>
    %cst = arith.constant dense<0.000000e+00> : vector<128x128xf32>
    %3 = tpu.matmul %1, %2, %cst {dimension_numbers = #tpu.dot_dimension_numbers<[1], [0], [0], [1], [0, 0, 1, 1], [], []>} : vector<128x128xf32>, vector<128x128xf32>, vector<128x128xf32> -> vector<128x128xf32>
    %c0_4 = arith.constant 0 : index
    %c0_5 = arith.constant 0 : index
    %4 = vector.load %arg4[%c0_4, %c0_5] : memref<1x128xf32, #tpu.memory_space<vmem>>, vector<1x128xf32>
    %5 = vector.broadcast %4 : vector<1x128xf32> to vector<128x128xf32>
    %6 = arith.addf %3, %5 : vector<128x128xf32>
    %cst_6 = arith.constant dense<0.000000e+00> : vector<128xf32>
    %7 = vector.multi_reduction <add>, %6, %cst_6 [0] : vector<128x128xf32> to vector<128xf32>
    %8 = vector.shape_cast %7 : vector<128xf32> to vector<1x128xf32>
    %9 = arith.mulf %6, %6 : vector<128x128xf32>
    %cst_7 = arith.constant dense<0.000000e+00> : vector<128xf32>
    %10 = vector.multi_reduction <add>, %9, %cst_7 [0] : vector<128x128xf32> to vector<128xf32>
    %11 = vector.shape_cast %10 : vector<128xf32> to vector<1x128xf32>
    %12 = tpu.concatenate %8, %11 in 0 : vector<1x128xf32>, vector<1x128xf32> -> vector<2x128xf32>
    %13 = vector.shape_cast %12 : vector<2x128xf32> to vector<1x1x2x128xf32>
    %c0_8 = arith.constant 0 : index
    %c0_9 = arith.constant 0 : index
    %c0_10 = arith.constant 0 : index
    %c0_11 = arith.constant 0 : index
    %14 = vector.load %arg6[%c0_8, %c0_9, %c0_10, %c0_11] : memref<1x1x2x128xf32, #tpu.memory_space<vmem>>, vector<1x1x2x128xf32>
    tpu.vector_store %arg6[%c0_8, %c0_9, %c0_10, %c0_11], %13 {strides = array<i32>} : memref<1x1x2x128xf32, #tpu.memory_space<vmem>>, vector<1x1x2x128xf32>,
    %c0_12 = arith.constant 0 : index
    %c0_13 = arith.constant 0 : index
    %c0_14 = arith.constant 0 : index
    %15 = vector.load %arg5[%c0_12, %c0_13, %c0_14] : memref<1x128x128xf32, #tpu.memory_space<vmem>>, vector<1x128x128xf32>
    %16 = vector.shape_cast %15 : vector<1x128x128xf32> to vector<128x128xf32>
    %17 = vector.shape_cast %6 : vector<128x128xf32> to vector<1x128x128xf32>
    tpu.vector_store %arg5[%c0_12, %c0_13, %c0_14], %17 {strides = array<i32>} : memref<1x128x128xf32, #tpu.memory_space<vmem>>, vector<1x128x128xf32>,
    return
  }
  func.func @transform_0(%arg0: i32, %arg1: i32) -> (i32, i32, i32) {
    %c0_i32 = arith.constant 0 : i32
    %c0_i32_0 = arith.constant 0 : i32
    return %arg0, %arg1, %c0_i32 : i32, i32, i32
  }
  func.func @transform_1(%arg0: i32, %arg1: i32) -> (i32, i32) {
    %c0_i32 = arith.constant 0 : i32
    %c0_i32_0 = arith.constant 0 : i32
    %c0_i32_1 = arith.constant 0 : i32
    return %c0_i32, %c0_i32_0 : i32, i32
  }
  func.func @transform_2(%arg0: i32, %arg1: i32) -> (i32, i32) {
    %c0_i32 = arith.constant 0 : i32
    %c0_i32_0 = arith.constant 0 : i32
    %c0_i32_1 = arith.constant 0 : i32
    return %c0_i32, %c0_i32_0 : i32, i32
  }
  func.func @transform_3(%arg0: i32, %arg1: i32) -> (i32, i32, i32) {
    %c0_i32 = arith.constant 0 : i32
    %c0_i32_0 = arith.constant 0 : i32
    return %arg0, %arg1, %c0_i32 : i32, i32, i32
  }
  func.func @transform_4(%arg0: i32, %arg1: i32) -> (i32, i32, i32, i32) {
    %c0_i32 = arith.constant 0 : i32
    %c0_i32_0 = arith.constant 0 : i32
    %c0_i32_1 = arith.constant 0 : i32
    return %arg0, %arg1, %c0_i32, %c0_i32_0 : i32, i32, i32, i32
  }
}

</mosaic_0001>

<llo_original>
// kernel: tpu_custom_call.1
$region0: #{tpu_custom_call.1}
  #allocation0 [shape = 'u32[]', space=smem, size = 0x4, offset = 0x4, fixed_abs, tag = 'smem constant byte address 0x4 - core index']
  #allocation1 [shape = 'u32[144,128]{1,0:T(1,128)}', space=vmem, size = 0x12000, scoped, tag = 'internal scratch']
  %s0 = inlined_call_operand.hbm [shape: f32[4,128,128], index: 0, kind: input, shape index: {}]
  %s1 = inlined_call_operand.hbm [shape: f32[128,128], index: 1, kind: input, shape index: {}]
  %s2 = inlined_call_operand.vmem [shape: f32[1,128], index: 2, kind: input, shape index: {}]
  %s3 = inlined_call_operand.hbm [shape: f32[4,128,128], index: 3, kind: output, shape index: {0}]
  %s4 = inlined_call_operand.hbm [shape: f32[4,1,2,128], index: 4, kind: output, shape index: {1}]
  %5 = xla_tuple %s3, %s4
  %s6 = sld [smem:[#allocation0]]
  $region61: #{tpu_custom_call.1} parent=0
    _
  %s8 = ssub.s32 1, %s6
  %s9 = scalar_select 0, %s8, %s6
  $region1: #{tpu_custom_call.1} parent=0
    #allocation2 [shape = 'u8[131072]{0}', space=vmem, size = 0x20000, scoped, tag = 'input window, operand 0']
    #allocation3 [shape = 's32[2]{0}', space=sflag, size = 0x8, scoped, tag = 'scoped memory for tpu_custom_call.1']
    #allocation4 [shape = 's32[2]{0}', space=sflag, size = 0x8, scoped, tag = 'scoped memory for tpu_custom_call.1']
    #allocation5 [shape = 'u8[65536]{0}', space=vmem, size = 0x10000, scoped, tag = 'input window, operand 1, single buffered']
    #allocation6 [shape = 's32[1]{0}', space=sflag, size = 0x4, scoped, tag = 'scoped memory for tpu_custom_call.1']
    #allocation7 [shape = 'u8[131072]{0}', space=vmem, size = 0x20000, scoped, tag = 'output window, operand 0']
    #allocation8 [shape = 'u8[2048]{0}', space=vmem, size = 0x800, scoped, tag = 'output window, operand 1']
    #allocation9 [shape = 's32[2]{0}', space=sflag, size = 0x8, scoped, tag = 'scoped memory for tpu_custom_call.1']
    %10 = vsyncpa [#allocation3], 0
    %s11 = scalar_lea.sflag [#allocation3], 1
    %12 = vsyncpa %s11, 0
    %13 = vsyncpa [#allocation6], 0
    %14 = vsyncpa [#allocation4], 0
    %s15 = scalar_lea.sflag [#allocation4], 1
    %16 = vsyncpa %s15, 0
    %17 = vsyncpa [#allocation9], 0
    %s18 = scalar_lea.sflag [#allocation9], 1
    %19 = vsyncpa %s18, 0
    loop: start=0, step=1, limit=6
    $region2: #{tpu_custom_call.1} parent=1 // loop_pre_header
      _
    $region3: #{tpu_custom_call.1} parent=1 // loop_header
      %s21 = sphi 0, %s25
      %p22 = scmp.ge.s32.totalorder %s21, 6
      %s28 = sphi 0, %s40
      %s29 = sphi 0, %s36
      %s30 = sphi 0, %s28
      %s31 = sphi 0, %s29
      %s32 = sphi 0, %s30
      %s33 = sphi 0, %s31
      %s45 = sphi 0, %s47
      %s48 = sphi 0, %s45
      %s49 = sphi 0, %s48
      %s65 = sphi 0, %s49
      %s69 = sphi 0, %s69
      %s71 = sphi 0, %s69
      %s72 = sphi 0, %s71
      %s86 = sphi 0, %s72
      %s90 = sphi 0, %s90
      %s92 = sphi 0, %s90
      %s93 = sphi 0, %s92
      %s107 = sphi 0, %s93
      %s115 = sphi 0, %s117
      %s118 = sphi 0, %s115
      %s119 = sphi 0, %s118
      %s135 = sphi 0, %s119
      %s143 = sphi 0, %s145
      %s146 = sphi 0, %s143
      %s147 = sphi 0, %s146
      %s163 = sphi 0, %s147
    $region4: #{tpu_custom_call.1} parent=1 // loop_header_branch
      %24 = sbr.rel (%p22) target = $region8
    $region5: #{tpu_custom_call.1} parent=1 // loop_body
      %s26 = ssub.s32 %s21, 1
      %s27 = ssub.s32 %s21, 2
      %s34 = sadd.s32 1, %s29
      %p35 = scmp.ge.s32.totalorder %s34, 1
      %s36 = scalar_select %p35, 0, %s34
      %s37 = sadd.s32 1, %s28
      %s38 = scalar_select %p35, %s37, %s28
      %p39 = scmp.ge.s32.totalorder %s38, 4
      %s40 = scalar_select %p39, 0, %s38
      %s41 = ssub.s32 %s28, %s40
      %s42 = ssub.s32 %s29, %s36
      %s43 = sor.u32 %s41, %s42
      %p44 = scmp.eq.s32.totalorder %s43, 0
      %s46 = sadd.s32 %s45, 1
      %s47 = scalar_select %p44, %s45, %s46
      %p50 = pneg %p44
      %p51 = scmp.eq.s32.totalorder %s21, 3
      %p52 = por %p50, %p51
      %p53 = scmp.ne.s32.totalorder %s45, %s48
      %p54 = scmp.eq.s32.totalorder %s21, 0
      %p55 = por %p53, %p54
      %p56 = scmp.ne.s32.totalorder %s45, %s48
      %p57 = scmp.eq.s32.totalorder %s26, 3
      %p58 = por %p56, %p57
      %p59 = scmp.ne.s32.totalorder %s48, %s49
      %p60 = scmp.eq.s32.totalorder %s26, 0
      %p61 = por %p59, %p60
      %p62 = scmp.ne.s32.totalorder %s48, %s49
      %p63 = scmp.eq.s32.totalorder %s27, 3
      %p64 = por %p62, %p63
      %p66 = scmp.ne.s32.totalorder %s49, %s65
      %p67 = scmp.eq.s32.totalorder %s27, 0
      %p68 = por %p66, %p67
      %s70 = sadd.s32 %s69, 1
      %p73 = scmp.eq.s32.totalorder %s21, 3
      %p74 = scmp.ne.s32.totalorder %s69, %s71
      %p75 = scmp.eq.s32.totalorder %s21, 0
      %p76 = por %p74, %p75
      %p77 = scmp.ne.s32.totalorder %s69, %s71
      %p78 = scmp.eq.s32.totalorder %s26, 3
      %p79 = por %p77, %p78
      %p80 = scmp.ne.s32.totalorder %s71, %s72
      %p81 = scmp.eq.s32.totalorder %s26, 0
      %p82 = por %p80, %p81
      %p83 = scmp.ne.s32.totalorder %s71, %s72
      %p84 = scmp.eq.s32.totalorder %s27, 3
      %p85 = por %p83, %p84
      %p87 = scmp.ne.s32.totalorder %s72, %s86
      %p88 = scmp.eq.s32.totalorder %s27, 0
      %p89 = por %p87, %p88
      %s91 = sadd.s32 %s90, 1
      %p94 = scmp.eq.s32.totalorder %s21, 3
      %p95 = scmp.ne.s32.totalorder %s90, %s92
      %p96 = scmp.eq.s32.totalorder %s21, 0
      %p97 = por %p95, %p96
      %p98 = scmp.ne.s32.totalorder %s90, %s92
      %p99 = scmp.eq.s32.totalorder %s26, 3
      %p100 = por %p98, %p99
      %p101 = scmp.ne.s32.totalorder %s92, %s93
      %p102 = scmp.eq.s32.totalorder %s26, 0
      %p103 = por %p101, %p102
      %p104 = scmp.ne.s32.totalorder %s92, %s93
      %p105 = scmp.eq.s32.totalorder %s27, 3
      %p106 = por %p104, %p105
      %p108 = scmp.ne.s32.totalorder %s93, %s107
      %p109 = scmp.eq.s32.totalorder %s27, 0
      %p110 = por %p108, %p109
      %s111 = ssub.s32 %s28, %s40
      %s112 = ssub.s32 %s29, %s36
      %s113 = sor.u32 %s111, %s112
      %p114 = scmp.eq.s32.totalorder %s113, 0
      %s116 = sadd.s32 %s115, 1
      %s117 = scalar_select %p114, %s115, %s116
      %p120 = pneg %p114
      %p121 = scmp.eq.s32.totalorder %s21, 3
      %p122 = por %p120, %p121
      %p123 = scmp.ne.s32.totalorder %s115, %s118
      %p124 = scmp.eq.s32.totalorder %s21, 0
      %p125 = por %p123, %p124
      %p126 = scmp.ne.s32.totalorder %s115, %s118
      %p127 = scmp.eq.s32.totalorder %s26, 3
      %p128 = por %p126, %p127
      %p129 = scmp.ne.s32.totalorder %s118, %s119
      %p130 = scmp.eq.s32.totalorder %s26, 0
      %p131 = por %p129, %p130
      %p132 = scmp.ne.s32.totalorder %s118, %s119
      %p133 = scmp.eq.s32.totalorder %s27, 3
      %p134 = por %p132, %p133
      %p136 = scmp.ne.s32.totalorder %s119, %s135
      %p137 = scmp.eq.s32.totalorder %s27, 0
      %p138 = por %p136, %p137
      %s139 = ssub.s32 %s28, %s40
      %s140 = ssub.s32 %s29, %s36
      %s141 = sor.u32 %s139, %s140
      %p142 = scmp.eq.s32.totalorder %s141, 0
      %s144 = sadd.s32 %s143, 1
      %s145 = scalar_select %p142, %s143, %s144
      %p148 = pneg %p142
      %p149 = scmp.eq.s32.totalorder %s21, 3
      %p150 = por %p148, %p149
      %p151 = scmp.ne.s32.totalorder %s143, %s146
      %p152 = scmp.eq.s32.totalorder %s21, 0
      %p153 = por %p151, %p152
      %p154 = scmp.ne.s32.totalorder %s143, %s146
      %p155 = scmp.eq.s32.totalorder %s26, 3
      %p156 = por %p154, %p155
      %p157 = scmp.ne.s32.totalorder %s146, %s147
      %p158 = scmp.eq.s32.totalorder %s26, 0
      %p159 = por %p157, %p158
      %p160 = scmp.ne.s32.totalorder %s146, %s147
      %p161 = scmp.eq.s32.totalorder %s27, 3
      %p162 = por %p160, %p161
      %p164 = scmp.ne.s32.totalorder %s147, %s163
      %p165 = scmp.eq.s32.totalorder %s27, 0
      %p166 = por %p164, %p165
      %p167 = scmp.le.s32.totalorder 1, %s21
      %p168 = scmp.lt.s32.totalorder %s21, 5
      %p169 = pnand %p167, %p168
      %p170 = pneg %p169
      // Predicated region
      $region9: #{tpu_custom_call.1} parent=5 // pred_check
        _
      $region10: #{tpu_custom_call.1} parent=5 // pred_check_branch
        %172 = sbr.rel (%p169) target = $region12
      $region11: #{tpu_custom_call.1} parent=5 // pred_region
        %s173 = ssub.s32 %s21, 1
        // Predicated region
        $region13: #{tpu_custom_call.1} parent=11 // pred_check
          %p174 = pneg %p82
        $region14: #{tpu_custom_call.1} parent=11 // pred_check_branch
          %176 = sbr.rel (%p174) target = $region16
        $region15: #{tpu_custom_call.1} parent=11 // pred_region
          %s178 = ssub.s32 2048, 2048
          %179 = vsyncadd [#allocation6], %s178
          %s180 = sshll.u32 [#allocation5], 4
          %s181 = int_to_ptr.vmem [resolvable:$true] %s180
          %186 = dma.hbm_to_vmem [thread:$0]  %s1, 2048, %s181, [#allocation6], 128, 128, 8
        $region16: #{tpu_custom_call.1} parent=11 // pred_fallthru
          _
        // Predicated region
        $region17: #{tpu_custom_call.1} parent=11 // pred_check
          %p187 = pneg %p103
        $region18: #{tpu_custom_call.1} parent=11 // pred_check_branch
          %189 = sbr.rel (%p187) target = $region20
        $region19: #{tpu_custom_call.1} parent=11 // pred_region
          _
        $region20: #{tpu_custom_call.1} parent=11 // pred_fallthru
          _
      $region12: #{tpu_custom_call.1} parent=5 // pred_fallthru
        _
      %p190 = scmp.lt.s32.totalorder %s21, 4
      // Predicated region
      $region21: #{tpu_custom_call.1} parent=5 // pred_check
        %p191 = pneg %p190
      $region22: #{tpu_custom_call.1} parent=5 // pred_check_branch
        %193 = sbr.rel (%p191) target = $region24
      $region23: #{tpu_custom_call.1} parent=5 // pred_region
        // Predicated region
        $region25: #{tpu_custom_call.1} parent=23 // pred_check
          %p194 = pneg %p55
        $region26: #{tpu_custom_call.1} parent=23 // pred_check_branch
          %196 = sbr.rel (%p194) target = $region28
        $region27: #{tpu_custom_call.1} parent=23 // pred_region
          %s197 = sand.u32 %s45, 1
          %s198 = scalar_lea.sflag [#allocation3], %s197
          %s199 = sand.u32 %s45, 1
          %s200 = smul.addr %s199, 128
          %s201 = scalar_lea.vmem [#allocation2], %s200
          %s202 = smul.u32 16, %s29
          %s204 = ssub.s32 2048, 2048
          %205 = vsyncadd %s198, %s204
          %s206 = smul.addr %s28, 16
          %s207 = sadd.s32 %s202, %s206
          %s208 = smul.addr %s207, 128
          %s209 = scalar_lea.hbm %s0, %s208
          %s210 = sshll.u32 %s201, 4
          %s211 = int_to_ptr.vmem [resolvable:$true] %s210
          %216 = dma.hbm_to_vmem [thread:$0]  %s209, 2048, %s211, %s198, 128, 128, 8
        $region28: #{tpu_custom_call.1} parent=23 // pred_fallthru
          _
      $region24: #{tpu_custom_call.1} parent=5 // pred_fallthru
        _
      %p217 = scmp.le.s32.totalorder 1, %s21
      %p218 = scmp.lt.s32.totalorder %s21, 5
      %p219 = pnand %p217, %p218
      %p220 = pneg %p219
      // Predicated region
      $region29: #{tpu_custom_call.1} parent=5 // pred_check
        _
      $region30: #{tpu_custom_call.1} parent=5 // pred_check_branch
        %222 = sbr.rel (%p219) target = $region32
      $region31: #{tpu_custom_call.1} parent=5 // pred_region
        %s223 = ssub.s32 %s21, 1
        %s224 = sand.u32 %s48, 1
        %s225 = scalar_lea.sflag [#allocation3], %s224
        %s226 = sand.u32 %s48, 1
        %s227 = smul.addr %s226, 128
        %s228 = scalar_lea.vmem [#allocation2], %s227
        // Predicated region
        $region33: #{tpu_custom_call.1} parent=31 // pred_check
          %p229 = pneg %p61
        $region34: #{tpu_custom_call.1} parent=31 // pred_check_branch
          %231 = sbr.rel (%p229) target = $region36
        $region35: #{tpu_custom_call.1} parent=31 // pred_region
          %232 = dma.done %s225, 2048
        $region36: #{tpu_custom_call.1} parent=31 // pred_fallthru
          _
        // Predicated region
        $region37: #{tpu_custom_call.1} parent=31 // pred_check
          %p233 = pneg %p82
        $region38: #{tpu_custom_call.1} parent=31 // pred_check_branch
          %235 = sbr.rel (%p233) target = $region40
        $region39: #{tpu_custom_call.1} parent=31 // pred_region
          %236 = dma.done [#allocation6], 2048
        $region40: #{tpu_custom_call.1} parent=31 // pred_fallthru
          _
        %s237 = sand.u32 %s48, 1
        %s238 = scalar_lea.sflag [#allocation3], %s237
        %s239 = sand.u32 %s48, 1
        %s240 = smul.addr %s239, 128
        %s241 = scalar_lea.vmem [#allocation2], %s240
        %p242 = pneg %p61
        %p243 = pneg %p58
        %p244 = pneg %p82
        %p245 = pneg %p79
        %p246 = pneg %p103
        %p247 = pneg %p100
        %p248 = pneg %p131
        %p249 = pneg %p128
        %s250 = sand.u32 %s118, 1
        %s251 = scalar_lea.sflag [#allocation4], %s250
        %s252 = sand.u32 %s118, 1
        %s253 = smul.addr %s252, 128
        %s254 = scalar_lea.vmem [#allocation7], %s253
        %p255 = pneg %p159
        %p256 = pneg %p156
        %s257 = sand.u32 %s146, 1
        %s258 = scalar_lea.sflag [#allocation9], %s257
        %s259 = sand.u32 %s146, 1
        %s260 = smul.addr %s259, 2
        %s261 = scalar_lea.vmem [#allocation8], %s260
        %s262 = smul.u32 16, %s31
        %s263 = smul.u32 16, %s31
        %v264 = vld [vmem:[%s228] sm:$0xff]
        %v265 = vld [vmem:[%s228 + $0x8] sm:$0xff]
        %v266 = vld [vmem:[%s228 + $0x10] sm:$0xff]
        %v267 = vld [vmem:[%s228 + $0x18] sm:$0xff]
        %v268 = vld [vmem:[%s228 + $0x20] sm:$0xff]
        %v269 = vld [vmem:[%s228 + $0x28] sm:$0xff]
        %v270 = vld [vmem:[%s228 + $0x30] sm:$0xff]
        %v271 = vld [vmem:[%s228 + $0x38] sm:$0xff]
        %v272 = vld [vmem:[%s228 + $0x40] sm:$0xff]
        %v273 = vld [vmem:[%s228 + $0x48] sm:$0xff]
        %v274 = vld [vmem:[%s228 + $0x50] sm:$0xff]
        %v275 = vld [vmem:[%s228 + $0x58] sm:$0xff]
        %v276 = vld [vmem:[%s228 + $0x60] sm:$0xff]
        %v277 = vld [vmem:[%s228 + $0x68] sm:$0xff]
        %v278 = vld [vmem:[%s228 + $0x70] sm:$0xff]
        %v279 = vld [vmem:[%s228 + $0x78] sm:$0xff]
        %v280 = vld [vmem:[#allocation5] sm:$0xff]
        %v281 = vld [vmem:[#allocation5 + $0x8] sm:$0xff]
        %v282 = vld [vmem:[#allocation5 + $0x10] sm:$0xff]
        %v283 = vld [vmem:[#allocation5 + $0x18] sm:$0xff]
        %v284 = vld [vmem:[#allocation5 + $0x20] sm:$0xff]
        %v285 = vld [vmem:[#allocation5 + $0x28] sm:$0xff]
        %v286 = vld [vmem:[#allocation5 + $0x30] sm:$0xff]
        %v287 = vld [vmem:[#allocation5 + $0x38] sm:$0xff]
        %v288 = vld [vmem:[#allocation5 + $0x40] sm:$0xff]
        %v289 = vld [vmem:[#allocation5 + $0x48] sm:$0xff]
        %v290 = vld [vmem:[#allocation5 + $0x50] sm:$0xff]
        %v291 = vld [vmem:[#allocation5 + $0x58] sm:$0xff]
        %v292 = vld [vmem:[#allocation5 + $0x60] sm:$0xff]
        %v293 = vld [vmem:[#allocation5 + $0x68] sm:$0xff]
        %v294 = vld [vmem:[#allocation5 + $0x70] sm:$0xff]
        %v295 = vld [vmem:[#allocation5 + $0x78] sm:$0xff]
        %v296 = vld [vmem:[%s2] sm:$0x1]
        %v298 = vlaneseq
        %v299 = vshrl.u32 %v298, 7
        %v300 = vsub.s32 0, %v299
        %v301 = vrot.slane %v296, %v300
        %303 = vmatprep.subr.mxu0 0.0
        %304 = vmatpush1.msra.mxu0 %v280
        %305 = vmatprep.subr.mxu0 0.0
        %306 = vmatpush1.msra.mxu0 %v281
        %307 = vmatprep.subr.mxu0 0.0
        %308 = vmatpush1.msra.mxu0 %v282
        %309 = vmatprep.subr.mxu0 0.0
        %310 = vmatpush1.msra.mxu0 %v283
        %311 = vmatprep.subr.mxu0 0.0
        %312 = vmatpush1.msra.mxu0 %v284
        %313 = vmatprep.subr.mxu0 0.0
        %314 = vmatpush1.msra.mxu0 %v285
        %315 = vmatprep.subr.mxu0 0.0
        %316 = vmatpush1.msra.mxu0 %v286
        %317 = vmatprep.subr.mxu0 0.0
        %318 = vmatpush1.msra.mxu0 %v287
        %319 = vmatprep.subr.mxu0 0.0
        %320 = vmatpush1.msra.mxu0 %v288
        %321 = vmatprep.subr.mxu0 0.0
        %322 = vmatpush1.msra.mxu0 %v289
        %323 = vmatprep.subr.mxu0 0.0
        %324 = vmatpush1.msra.mxu0 %v290
        %325 = vmatprep.subr.mxu0 0.0
        %326 = vmatpush1.msra.mxu0 %v291
        %327 = vmatprep.subr.mxu0 0.0
        %328 = vmatpush1.msra.mxu0 %v292
        %329 = vmatprep.subr.mxu0 0.0
        %330 = vmatpush1.msra.mxu0 %v293
        %331 = vmatprep.subr.mxu0 0.0
        %332 = vmatpush1.msra.mxu0 %v294
        %333 = vmatprep.subr.mxu0 0.0
        %334 = vmatpush1.msra.mxu0 %v295
        %335 = vmatprep.subr.mxu0 0.0
        %336 = vmatpush1.msra.mxu0 0.0
        %337 = vmatprep.subr.mxu0 0.0
        %338 = vmatpush1.msra.mxu0 0.0
        %339 = vmatprep.subr.mxu0 0.0
        %340 = vmatpush1.msra.mxu0 0.0
        %341 = vmatprep.subr.mxu0 0.0
        %342 = vmatpush1.msra.mxu0 0.0
        %343 = vmatprep.subr.mxu0 0.0
        %344 = vmatpush1.msra.mxu0 0.0
        %345 = vmatprep.subr.mxu0 0.0
        %346 = vmatpush1.msra.mxu0 0.0
        %347 = vmatprep.subr.mxu0 0.0
        %348 = vmatpush1.msra.mxu0 0.0
        %349 = vmatprep.subr.mxu0 0.0
        %350 = vmatpush1.msra.mxu0 0.0
        %351 = vmatprep.subr.mxu0 0.0
        %352 = vmatpush1.msra.mxu0 0.0
        %353 = vmatprep.subr.mxu0 0.0
        %354 = vmatpush1.msra.mxu0 0.0
        %355 = vmatprep.subr.mxu0 0.0
        %356 = vmatpush1.msra.mxu0 0.0
        %357 = vmatprep.subr.mxu0 0.0
        %358 = vmatpush1.msra.mxu0 0.0
        %359 = vmatprep.subr.mxu0 0.0
        %360 = vmatpush1.msra.mxu0 0.0
        %361 = vmatprep.subr.mxu0 0.0
        %362 = vmatpush1.msra.mxu0 0.0
        %363 = vmatprep.subr.mxu0 0.0
        %364 = vmatpush1.msra.mxu0 0.0
        %365 = vmatprep.subr.mxu0 0.0
        %366 = vmatpush1.msra.mxu0 0.0
        %367 = vmatprep.mubr.f32.mxu0 0.0
        %368 = vmatmul.mubr.f32.gmra.mrb[0].mxu0 %v264
        %v369 = vpop.f32.mrb[0].mxu0
        %v370 = vadd.f32 %v301, %v369
        %v371 = vpop.f32.mrb[0].mxu0
        %372 = vmatprep.mubr.f32.mxu0 0.0
        %373 = vmatmul.mubr.f32.gmra.mrb[0].mxu0 %v265
        %v374 = vpop.f32.mrb[0].mxu0
        %v375 = vadd.f32 %v301, %v374
        %v376 = vpop.f32.mrb[0].mxu0
        %377 = vmatprep.mubr.f32.mxu0 0.0
        %378 = vmatmul.mubr.f32.gmra.mrb[0].mxu0 %v266
        %v379 = vpop.f32.mrb[0].mxu0
        %v380 = vadd.f32 %v301, %v379
        %v381 = vpop.f32.mrb[0].mxu0
        %382 = vmatprep.mubr.f32.mxu0 0.0
        %383 = vmatmul.mubr.f32.gmra.mrb[0].mxu0 %v267
        %v384 = vpop.f32.mrb[0].mxu0
        %v385 = vadd.f32 %v301, %v384
        %v386 = vpop.f32.mrb[0].mxu0
        %387 = vmatprep.mubr.f32.mxu0 0.0
        %388 = vmatmul.mubr.f32.gmra.mrb[0].mxu0 %v268
        %v389 = vpop.f32.mrb[0].mxu0
        %v390 = vadd.f32 %v301, %v389
        %v391 = vpop.f32.mrb[0].mxu0
        %392 = vmatprep.mubr.f32.mxu0 0.0
        %393 = vmatmul.mubr.f32.gmra.mrb[0].mxu0 %v269
        %v394 = vpop.f32.mrb[0].mxu0
        %v395 = vadd.f32 %v301, %v394
        %v396 = vpop.f32.mrb[0].mxu0
        %397 = vmatprep.mubr.f32.mxu0 0.0
        %398 = vmatmul.mubr.f32.gmra.mrb[0].mxu0 %v270
        %v399 = vpop.f32.mrb[0].mxu0
        %v400 = vadd.f32 %v301, %v399
        %v401 = vpop.f32.mrb[0].mxu0
        %402 = vmatprep.mubr.f32.mxu0 0.0
        %403 = vmatmul.mubr.f32.gmra.mrb[0].mxu0 %v271
        %v404 = vpop.f32.mrb[0].mxu0
        %v405 = vadd.f32 %v301, %v404
        %v406 = vpop.f32.mrb[0].mxu0
        %407 = vmatprep.mubr.f32.mxu0 0.0
        %408 = vmatmul.mubr.f32.gmra.mrb[0].mxu0 %v272
        %v409 = vpop.f32.mrb[0].mxu0
        %v410 = vadd.f32 %v301, %v409
        %v411 = vpop.f32.mrb[0].mxu0
        %412 = vmatprep.mubr.f32.mxu0 0.0
        %413 = vmatmul.mubr.f32.gmra.mrb[0].mxu0 %v273
        %v414 = vpop.f32.mrb[0].mxu0
        %v415 = vadd.f32 %v301, %v414
        %v416 = vpop.f32.mrb[0].mxu0
        %417 = vmatprep.mubr.f32.mxu0 0.0
        %418 = vmatmul.mubr.f32.gmra.mrb[0].mxu0 %v274
        %v419 = vpop.f32.mrb[0].mxu0
        %v420 = vadd.f32 %v301, %v419
        %v421 = vpop.f32.mrb[0].mxu0
        %422 = vmatprep.mubr.f32.mxu0 0.0
        %423 = vmatmul.mubr.f32.gmra.mrb[0].mxu0 %v275
        %v424 = vpop.f32.mrb[0].mxu0
        %v425 = vadd.f32 %v301, %v424
        %v426 = vpop.f32.mrb[0].mxu0
        %427 = vmatprep.mubr.f32.mxu0 0.0
        %428 = vmatmul.mubr.f32.gmra.mrb[0].mxu0 %v276
        %v429 = vpop.f32.mrb[0].mxu0
        %v430 = vadd.f32 %v301, %v429
        %v431 = vpop.f32.mrb[0].mxu0
        %432 = vmatprep.mubr.f32.mxu0 0.0
        %433 = vmatmul.mubr.f32.gmra.mrb[0].mxu0 %v277
        %v434 = vpop.f32.mrb[0].mxu0
        %v435 = vadd.f32 %v301, %v434
        %v436 = vpop.f32.mrb[0].mxu0
        %437 = vmatprep.mubr.f32.mxu0 0.0
        %438 = vmatmul.mubr.f32.gmra.mrb[0].mxu0 %v278
        %v439 = vpop.f32.mrb[0].mxu0
        %v440 = vadd.f32 %v301, %v439
        %v441 = vpop.f32.mrb[0].mxu0
        %442 = vmatprep.mubr.f32.mxu0 0.0
        %443 = vmatmul.mubr.f32.gmra.mrb[0].mxu0 %v279
        %v444 = vpop.f32.mrb[0].mxu0
        %v445 = vadd.f32 %v301, %v444
        %v446 = vpop.f32.mrb[0].mxu0
        %447 = vdwg.mxu0
        %v448 = vadd.f32 %v370, %v375
        %v449 = vadd.f32 %v448, %v380
        %v450 = vadd.f32 %v449, %v385
        %v451 = vadd.f32 %v450, %v390
        %v452 = vadd.f32 %v451, %v395
        %v453 = vadd.f32 %v452, %v400
        %v454 = vadd.f32 %v453, %v405
        %v455 = vadd.f32 %v454, %v410
        %v456 = vadd.f32 %v455, %v415
        %v457 = vadd.f32 %v456, %v420
        %v458 = vadd.f32 %v457, %v425
        %v459 = vadd.f32 %v458, %v430
        %v460 = vadd.f32 %v459, %v435
        %v461 = vadd.f32 %v460, %v440
        %v462 = vadd.f32 %v461, %v445
        %v463 = vrot.slane %v462, 4
        %v464 = vadd.f32 %v462, %v463
        %v465 = vrot.slane %v464, 2
        %v466 = vadd.f32 %v464, %v465
        %v467 = vrot.slane %v466, 1
        %v468 = vadd.f32 %v466, %v467
        %v469 = vmul.f32 %v370, %v370
        %v470 = vmul.f32 %v375, %v375
        %v471 = vmul.f32 %v380, %v380
        %v472 = vmul.f32 %v385, %v385
        %v473 = vmul.f32 %v390, %v390
        %v474 = vmul.f32 %v395, %v395
        %v475 = vmul.f32 %v400, %v400
        %v476 = vmul.f32 %v405, %v405
        %v477 = vmul.f32 %v410, %v410
        %v478 = vmul.f32 %v415, %v415
        %v479 = vmul.f32 %v420, %v420
        %v480 = vmul.f32 %v425, %v425
        %v481 = vmul.f32 %v430, %v430
        %v482 = vmul.f32 %v435, %v435
        %v483 = vmul.f32 %v440, %v440
        %v484 = vmul.f32 %v445, %v445
        %v485 = vadd.f32 %v469, %v470
        %v486 = vadd.f32 %v485, %v471
        %v487 = vadd.f32 %v486, %v472
        %v488 = vadd.f32 %v487, %v473
        %v489 = vadd.f32 %v488, %v474
        %v490 = vadd.f32 %v489, %v475
        %v491 = vadd.f32 %v490, %v476
        %v492 = vadd.f32 %v491, %v477
        %v493 = vadd.f32 %v492, %v478
        %v494 = vadd.f32 %v493, %v479
        %v495 = vadd.f32 %v494, %v480
        %v496 = vadd.f32 %v495, %v481
        %v497 = vadd.f32 %v496, %v482
        %v498 = vadd.f32 %v497, %v483
        %v499 = vadd.f32 %v498, %v484
        %v500 = vrot.slane %v499, 4
        %v501 = vadd.f32 %v499, %v500
        %v502 = vrot.slane %v501, 2
        %v503 = vadd.f32 %v501, %v502
        %v504 = vrot.slane %v503, 1
        %v505 = vadd.f32 %v503, %v504
        %vm506 = vcmask 1040384
        %v507 = vsel %vm506, %v468, %v505
        %508 = vst [vmem:[%s261] sm:$0x3] %v507
        %509 = vst [vmem:[%s254] sm:$0xff] %v370
        %510 = vst [vmem:[%s254 + $0x8] sm:$0xff] %v375
        %511 = vst [vmem:[%s254 + $0x10] sm:$0xff] %v380
        %512 = vst [vmem:[%s254 + $0x18] sm:$0xff] %v385
        %513 = vst [vmem:[%s254 + $0x20] sm:$0xff] %v390
        %514 = vst [vmem:[%s254 + $0x28] sm:$0xff] %v395
        %515 = vst [vmem:[%s254 + $0x30] sm:$0xff] %v400
        %516 = vst [vmem:[%s254 + $0x38] sm:$0xff] %v405
        %517 = vst [vmem:[%s254 + $0x40] sm:$0xff] %v410
        %518 = vst [vmem:[%s254 + $0x48] sm:$0xff] %v415
        %519 = vst [vmem:[%s254 + $0x50] sm:$0xff] %v420
        %520 = vst [vmem:[%s254 + $0x58] sm:$0xff] %v425
        %521 = vst [vmem:[%s254 + $0x60] sm:$0xff] %v430
        %522 = vst [vmem:[%s254 + $0x68] sm:$0xff] %v435
        %523 = vst [vmem:[%s254 + $0x70] sm:$0xff] %v440
        %524 = vst [vmem:[%s254 + $0x78] sm:$0xff] %v445
        %s525 = sand.u32 %s118, 1
        %s526 = scalar_lea.sflag [#allocation4], %s525
        %s527 = sand.u32 %s118, 1
        %s528 = smul.addr %s527, 128
        %s529 = scalar_lea.vmem [#allocation7], %s528
        %s530 = sand.u32 %s146, 1
        %s531 = scalar_lea.sflag [#allocation9], %s530
        %s532 = sand.u32 %s146, 1
        %s533 = smul.addr %s532, 2
        %s534 = scalar_lea.vmem [#allocation8], %s533
        // Predicated region
        $region41: #{tpu_custom_call.1} parent=31 // pred_check
          %p535 = pneg %p128
        $region42: #{tpu_custom_call.1} parent=31 // pred_check_branch
          %537 = sbr.rel (%p535) target = $region44
        $region43: #{tpu_custom_call.1} parent=31 // pred_region
          %s538 = smul.u32 16, %s31
          %s540 = ssub.s32 2048, 2048
          %541 = vsyncadd %s526, %s540
          %s542 = smul.addr %s30, 16
          %s543 = sadd.s32 %s538, %s542
          %s544 = smul.addr %s543, 128
          %s545 = scalar_lea.hbm %s3, %s544
          %s546 = sshll.u32 %s529, 4
          %s547 = int_to_ptr.vmem [resolvable:$true] %s546
          %552 = dma.vmem_to_hbm [thread:$0]  %s547, 2048, %s545, %s526, 128, 128, 8
        $region44: #{tpu_custom_call.1} parent=31 // pred_fallthru
          _
        // Predicated region
        $region45: #{tpu_custom_call.1} parent=31 // pred_check
          %p553 = pneg %p156
        $region46: #{tpu_custom_call.1} parent=31 // pred_check_branch
          %555 = sbr.rel (%p553) target = $region48
        $region47: #{tpu_custom_call.1} parent=31 // pred_region
          %s557 = ssub.s32 32, 32
          %558 = vsyncadd %s531, %s557
          %s559 = sadd.s32 %s31, %s30
          %s560 = smul.addr %s559, 32
          %s561 = scalar_lea.hbm %s4, %s560
          %s563 = sshll.u32 %s534, 4
          %s564 = int_to_ptr.vmem [resolvable:$true] %s563
          %566 = dma.vmem_to_hbm [thread:$0]  %s564, 32, %s561, %s531
        $region48: #{tpu_custom_call.1} parent=31 // pred_fallthru
          _
      $region32: #{tpu_custom_call.1} parent=5 // pred_fallthru
        _
      %p567 = scmp.le.s32.totalorder 2, %s21
      // Predicated region
      $region49: #{tpu_custom_call.1} parent=5 // pred_check
        %p568 = pneg %p567
      $region50: #{tpu_custom_call.1} parent=5 // pred_check_branch
        %570 = sbr.rel (%p568) target = $region52
      $region51: #{tpu_custom_call.1} parent=5 // pred_region
        %s571 = ssub.s32 %s21, 2
        // Predicated region
        $region53: #{tpu_custom_call.1} parent=51 // pred_check
          %p572 = pneg %p134
        $region54: #{tpu_custom_call.1} parent=51 // pred_check_branch
          %574 = sbr.rel (%p572) target = $region56
        $region55: #{tpu_custom_call.1} parent=51 // pred_region
          %s575 = sand.u32 %s119, 1
          %s576 = scalar_lea.sflag [#allocation4], %s575
          %s577 = sand.u32 %s119, 1
          %s578 = smul.addr %s577, 128
          %s579 = scalar_lea.vmem [#allocation7], %s578
          %580 = dma.done %s576, 2048
        $region56: #{tpu_custom_call.1} parent=51 // pred_fallthru
          _
        // Predicated region
        $region57: #{tpu_custom_call.1} parent=51 // pred_check
          %p581 = pneg %p162
        $region58: #{tpu_custom_call.1} parent=51 // pred_check_branch
          %583 = sbr.rel (%p581) target = $region60
        $region59: #{tpu_custom_call.1} parent=51 // pred_region
          %s584 = sand.u32 %s147, 1
          %s585 = scalar_lea.sflag [#allocation9], %s584
          %s586 = sand.u32 %s147, 1
          %s587 = smul.addr %s586, 2
          %s588 = scalar_lea.vmem [#allocation8], %s587
          %589 = dma.done %s585, 32
        $region60: #{tpu_custom_call.1} parent=51 // pred_fallthru
          _
      $region52: #{tpu_custom_call.1} parent=5 // pred_fallthru
        _
    $region6: #{tpu_custom_call.1} parent=1 // loop_footer
      %s25 = sadd.s32 1, %s21
    $region7: #{tpu_custom_call.1} parent=1 // loop_footer_branch
      %20 = sbr.rel target = $region3
    $region8: #{tpu_custom_call.1} parent=1 // loop_exit
      _
    %590 = vsyncpa [#allocation3], 1
    %s591 = scalar_lea.sflag [#allocation3], 1
    %592 = vsyncpa %s591, 1
    %593 = vsyncpa [#allocation6], 1
    %594 = vsyncpa [#allocation4], 1
    %s595 = scalar_lea.sflag [#allocation4], 1
    %596 = vsyncpa %s595, 1
    %597 = vsyncpa [#allocation9], 1
    %s598 = scalar_lea.sflag [#allocation9], 1
    %599 = vsyncpa %s598, 1

</llo_original>
